<compile_context>
chip_gen: v7x
topology: tpu7x:2x2x1
jax: 0.10.0
libtpu: 0.0.40
codegen_flags: <defaults>
</compile_context>

<pallas_src>
import math

import jax
import jax.numpy as jnp
from jax.experimental import pallas as pl
from jax.experimental.pallas import tpu as pltpu


def _round_up(a, b):
    return ((a + b - 1) // b) * b


def _round_down(a, b):
    return (a // b) * b


def _sublane(dtype):
    return {4: 8, 2: 16, 1: 32}.get(jnp.dtype(dtype).itemsize, 8)


def _vector_scale_kernel(x_ref, vec_ref, o_ref):
    # x_ref:   (block_rows, width) VMEM tile of x
    # vec_ref: (1, width)          (tiled) multiplier; sublane-broadcast by the
    #                              VPU (negligible against DMA in this regime)
    # o_ref:   (block_rows, width) output tile
    o_ref[...] = (x_ref[...] * vec_ref[...]).astype(o_ref.dtype)


def vector_forward(x, vec, *, block_rows=None, target_block_bytes=8 << 20):
    """y = x * vec (vec broadcast over x's last dim) via a Pallas TPU kernel."""
    vec = jnp.asarray(vec)
    vec_len = vec.shape[-1]
    assert x.shape[-1] == vec_len, "last dim of x must equal vec_len"

    out_dtype = jnp.promote_types(x.dtype, vec.dtype)  # PyTorch-style promotion

    lead_shape = x.shape[:-1]
    rows = 1
    for d in lead_shape:
        rows *= d
    if rows == 0:
        return jnp.zeros(x.shape, out_dtype)

    in_item = jnp.dtype(x.dtype).itemsize
    out_item = jnp.dtype(out_dtype).itemsize
    sublane = max(_sublane(x.dtype), _sublane(out_dtype))

    # ---- lane-dense folding (zero-copy) -------------------------------------
    # Fold k consecutive logical rows into the lane axis so the kernel's last
    # dim is a multiple of 128.  Pure reshape, no pad / slice / extra HBM pass.
    # If `rows` is not divisible by the fold, fall back to the unfolded layout
    # (last dim == full extent): still one zero-copy pass, just masked stores.
    k = 128 // math.gcd(vec_len, 128)
    if k > 1 and rows % k == 0:
        # Optionally widen the fold (longer contiguous lane-dense rows).
        while k * vec_len < 512 and rows % (2 * k) == 0:
            k *= 2
    else:
        k = 1
    width = k * vec_len
    rf = rows // k
    # TODO(synk): for pathologically large vec_len (block wider than VMEM
    # budget at 8 sublanes) a second grid axis over columns would be needed.

    # ---- block height & grid -------------------------------------------------
    bytes_per_row = width * (in_item + out_item)
    if block_rows is None:
        ideal_br = max(sublane,
                       _round_down(max(target_block_bytes // bytes_per_row, sublane),
                                   sublane))
        g = pl.cdiv(rf, ideal_br)
        if g == 1:
            # Split 2-ways for v7x megacore only if each half still moves >= 4 MiB.
            half = max(sublane, _round_up(pl.cdiv(rf, 2), sublane))
            if half * bytes_per_row >= (4 << 20) and half < _round_up(rf, sublane):
                g = 2
        elif g % 2 == 1:
            g += 1  # balanced split across v7x's two TCs; harmless on 1-TC chips
        br = max(sublane, _round_up(pl.cdiv(rf, g), sublane))
    else:
        br = max(sublane, min(_round_up(block_rows, sublane), _round_up(rf, sublane)))
    grid_n = pl.cdiv(rf, br)

    # ---- reshape (bitcast) and tiled multiplier ------------------------------
    x2d = x.reshape(rf, width)
    vec2d = (jnp.tile(vec, k) if k > 1 else vec).astype(out_dtype).reshape(1, width)

    out = pl.pallas_call(
        _vector_scale_kernel,
        out_shape=jax.ShapeDtypeStruct((rf, width), out_dtype),
        grid_spec=pltpu.PrefetchScalarGridSpec(
            num_scalar_prefetch=0,
            grid=(grid_n,),
            in_specs=[
                pl.BlockSpec((br, width), lambda i: (i, 0)),
                pl.BlockSpec((1, width), lambda i: (0, 0)),
            ],
            out_specs=pl.BlockSpec((br, width), lambda i: (i, 0)),
        ),
        compiler_params=pltpu.CompilerParams(
            dimension_semantics=("parallel",),
            vmem_limit_bytes=40 << 20,
        ),
        cost_estimate=pl.CostEstimate(
            flops=rows * vec_len,
            transcendentals=0,
            bytes_accessed=rows * vec_len * (in_item + out_item) + width * out_item,
        ),
    )(x2d, vec2d)

    return out.reshape(*lead_shape, vec_len)


if __name__ == "__main__":
    # Module hyperparameters (nn.Parameter init: vec = ones(vec_len) / temperature_ref).
    vec_len = 32
    temperature_ref = 2.0
    vec = jnp.ones((vec_len,), dtype=jnp.float32) / temperature_ref

    key = jax.random.PRNGKey(0)
    k0, k1, k2, k3, k4 = jax.random.split(key, 5)

    # 1) Small aligned input (batch=2, seq=8, hidden=vec_len).
    x0 = jax.random.normal(k0, (2, 8, vec_len), dtype=jnp.float32)
    y0 = jax.block_until_ready(vector_forward(x0, vec))
    assert y0.shape == x0.shape
    assert jnp.allclose(y0, x0 * vec, atol=1e-6, rtol=1e-6)

    # 2) Ragged leading shape (rows not divisible by the fold -> unfolded path).
    x1 = jax.random.normal(k1, (3, 5, vec_len), dtype=jnp.float32)
    y1 = jax.block_until_ready(vector_forward(x1, vec))
    assert y1.shape == x1.shape
    assert jnp.allclose(y1, x1 * vec, atol=1e-6, rtol=1e-6)

    # 3) Medium input (single lane-dense block).
    x2 = jax.random.normal(k2, (4, 256, vec_len), dtype=jnp.float32)
    y2 = jax.block_until_ready(vector_forward(x2, vec))
    assert y2.shape == x2.shape
    assert jnp.allclose(y2, x2 * vec, atol=1e-6, rtol=1e-6)

    # 4) Larger input: exercises the multi-block, even-count parallel grid.
    x3 = jax.random.normal(k3, (8, 4096, vec_len), dtype=jnp.float32)
    y3 = jax.block_until_ready(vector_forward(x3, vec))
    assert y3.shape == x3.shape
    assert jnp.allclose(y3, x3 * vec, atol=1e-6, rtol=1e-6)

    # 5) Mixed dtype: bf16 activations * f32 parameter -> f32 (PyTorch promotion).
    x4 = jax.random.normal(k4, (2, 64, vec_len), dtype=jnp.bfloat16)
    y4 = jax.block_until_ready(vector_forward(x4, vec))
    assert y4.dtype == jnp.float32 and y4.shape == x4.shape
    assert jnp.allclose(y4, x4.astype(jnp.float32) * vec, atol=1e-6, rtol=1e-6)

    print("KERNEL_OK")
</pallas_src>

<mosaic_0001>
module attributes {stable_mosaic.version = 11 : i64} {
  func.func @_vector_scale_kernel(%arg0: i32, %arg1: memref<8x512xf32, #tpu.memory_space<vmem>>, %arg2: memref<1x512xf32, #tpu.memory_space<vmem>>, %arg3: memref<8x512xf32, #tpu.memory_space<vmem>>) attributes {dimension_semantics = [#tpu.dimension_semantics<parallel>], iteration_bounds = array<i64: 1>, scalar_prefetch = 0 : i64, scratch_operands = 0 : i64, tpu.core_type = #tpu.core_type<tc>, window_params = [{transform_indices = @transform_0, window_bounds = array<i64: 8, 512>}, {pipeline_mode = #tpu.pipeline_mode<synchronous>, transform_indices = @transform_1, window_bounds = array<i64: 1, 512>}, {transform_indices = @transform_2, window_bounds = array<i64: 8, 512>}]} {
    %c0 = arith.constant 0 : index
    %c0_0 = arith.constant 0 : index
    %0 = vector.load %arg1[%c0, %c0_0] : memref<8x512xf32, #tpu.memory_space<vmem>>, vector<8x512xf32>
    %c0_1 = arith.constant 0 : index
    %c0_2 = arith.constant 0 : index
    %1 = vector.load %arg2[%c0_1, %c0_2] : memref<1x512xf32, #tpu.memory_space<vmem>>, vector<1x512xf32>
    %2 = vector.broadcast %1 : vector<1x512xf32> to vector<8x512xf32>
    %3 = arith.mulf %0, %2 : vector<8x512xf32>
    %c0_3 = arith.constant 0 : index
    %c0_4 = arith.constant 0 : index
    %4 = vector.load %arg3[%c0_3, %c0_4] : memref<8x512xf32, #tpu.memory_space<vmem>>, vector<8x512xf32>
    tpu.vector_store %arg3[%c0_3, %c0_4], %3 {strides = array<i32>} : memref<8x512xf32, #tpu.memory_space<vmem>>, vector<8x512xf32>,
    return
  }
  func.func @transform_0(%arg0: i32) -> (i32, i32) {
    %c0_i32 = arith.constant 0 : i32
    %c0_i32_0 = arith.constant 0 : i32
    return %arg0, %c0_i32 : i32, i32
  }
  func.func @transform_1(%arg0: i32) -> (i32, i32) {
    %c0_i32 = arith.constant 0 : i32
    %c0_i32_0 = arith.constant 0 : i32
    %c0_i32_1 = arith.constant 0 : i32
    return %c0_i32, %c0_i32_0 : i32, i32
  }
  func.func @transform_2(%arg0: i32) -> (i32, i32) {
    %c0_i32 = arith.constant 0 : i32
    %c0_i32_0 = arith.constant 0 : i32
    return %arg0, %c0_i32 : i32, i32
  }
}

</mosaic_0001>

<llo_original>
// kernel: tpu_custom_call.1
$region0: #{tpu_custom_call.1}
  #allocation0 [shape = 'u32[]', space=smem, size = 0x4, offset = 0x4, fixed_abs, tag = 'smem constant byte address 0x4 - core index']
  #allocation1 [shape = 'u32[144,128]{1,0:T(1,128)}', space=vmem, size = 0x12000, scoped, tag = 'internal scratch']
  %s0 = inlined_call_operand.hbm [shape: f32[1,512], index: 0, kind: input, shape index: {}]
  %s1 = inlined_call_operand.hbm [shape: f32[1,512], index: 1, kind: input, shape index: {}]
  %s2 = inlined_call_operand.hbm [shape: f32[1,512], index: 2, kind: output, shape index: {}]
  %s3 = sld [smem:[#allocation0]]
  $region26: #{tpu_custom_call.1} parent=0
    _
  %s5 = ssub.s32 1, %s3
  %s6 = scalar_select 0, %s5, %s3
  $region1: #{tpu_custom_call.1} parent=0
    #allocation2 [shape = 'u8[16384]{0}', space=vmem, size = 0x4000, scoped, tag = 'input window, operand 0, single buffered']
    #allocation3 [shape = 's32[1]{0}', space=sflag, size = 0x4, scoped, tag = 'scoped memory for tpu_custom_call.1']
    #allocation4 [shape = 's32[1]{0}', space=sflag, size = 0x4, scoped, tag = 'scoped memory for tpu_custom_call.1']
    #allocation5 [shape = 'u8[2048]{0}', space=vmem, size = 0x800, scoped, tag = 'input window, operand 1, single buffered']
    #allocation6 [shape = 's32[1]{0}', space=sflag, size = 0x4, scoped, tag = 'scoped memory for tpu_custom_call.1']
    #allocation7 [shape = 'u8[16384]{0}', space=vmem, size = 0x4000, scoped, tag = 'output window, operand 0, single buffered']
    %7 = vsyncpa [#allocation3], 0
    %8 = vsyncpa [#allocation6], 0
    %9 = vsyncpa [#allocation4], 0
    // Predicated region
    $region2: #{tpu_custom_call.1} parent=1 // pred_check
      _
    $region3: #{tpu_custom_call.1} parent=1 // pred_check_branch
      %11 = sbr.rel (0) target = $region5
    $region4: #{tpu_custom_call.1} parent=1 // pred_region
      %s13 = ssub.s32 512, 64
      %14 = vsyncadd [#allocation3], %s13
      %s15 = sshll.u32 [#allocation2], 4
      %s16 = int_to_ptr.vmem [resolvable:$true] %s15
      %21 = dma.hbm_to_vmem [thread:$0]  %s0, 64, %s16, [#allocation3], 64, 64, 4
    $region5: #{tpu_custom_call.1} parent=1 // pred_fallthru
      _
    // Predicated region
    $region6: #{tpu_custom_call.1} parent=1 // pred_check
      _
    $region7: #{tpu_custom_call.1} parent=1 // pred_check_branch
      %23 = sbr.rel (0) target = $region9
    $region8: #{tpu_custom_call.1} parent=1 // pred_region
      %s25 = ssub.s32 64, 64
      %26 = vsyncadd [#allocation6], %s25
      %s28 = sshll.u32 [#allocation5], 4
      %s29 = int_to_ptr.vmem [resolvable:$true] %s28
      %31 = dma.hbm_to_vmem [thread:$0]  %s1, 64, %s29, [#allocation6]
    $region9: #{tpu_custom_call.1} parent=1 // pred_fallthru
      _
    // Predicated region
    $region10: #{tpu_custom_call.1} parent=1 // pred_check
      _
    $region11: #{tpu_custom_call.1} parent=1 // pred_check_branch
      %33 = sbr.rel (0) target = $region13
    $region12: #{tpu_custom_call.1} parent=1 // pred_region
      %34 = dma.done [#allocation3], 512
    $region13: #{tpu_custom_call.1} parent=1 // pred_fallthru
      _
    // Predicated region
    $region14: #{tpu_custom_call.1} parent=1 // pred_check
      _
    $region15: #{tpu_custom_call.1} parent=1 // pred_check_branch
      %36 = sbr.rel (0) target = $region17
    $region16: #{tpu_custom_call.1} parent=1 // pred_region
      %37 = dma.done [#allocation6], 64
    $region17: #{tpu_custom_call.1} parent=1 // pred_fallthru
      _
    %v38 = vld [vmem:[#allocation2] sm:$0xf]
    %v39 = vld [vmem:[#allocation2 + $0x4] sm:$0xf]
    %v40 = vld [vmem:[#allocation2 + $0x8] sm:$0xf]
    %v41 = vld [vmem:[#allocation2 + $0xc] sm:$0xf]
    %v42 = vld [vmem:[#allocation2 + $0x10] sm:$0xf]
    %v43 = vld [vmem:[#allocation2 + $0x14] sm:$0xf]
    %v44 = vld [vmem:[#allocation2 + $0x18] sm:$0xf]
    %v45 = vld [vmem:[#allocation2 + $0x1c] sm:$0xf]
    %v46 = vld [vmem:[#allocation5] sm:$0xf]
    %v48 = vlaneseq
    %v49 = vshrl.u32 %v48, 7
    %v50 = vsub.s32 0, %v49
    %v51 = vrot.slane %v46, %v50
    %v52 = vlaneseq
    %v53 = vshrl.u32 %v52, 7
    %v54 = vsub.s32 1, %v53
    %v55 = vrot.slane %v46, %v54
    %v56 = vlaneseq
    %v57 = vshrl.u32 %v56, 7
    %v58 = vsub.s32 2, %v57
    %v59 = vrot.slane %v46, %v58
    %v60 = vlaneseq
    %v61 = vshrl.u32 %v60, 7
    %v62 = vsub.s32 3, %v61
    %v63 = vrot.slane %v46, %v62
    %v64 = vcombine.low %v51, %v55
    %v65 = vcombine.high %v51, %v55
    %v66 = vcombine.low %v59, %v63
    %v67 = vcombine.high %v59, %v63
    %v69 = vunpack.c.l.s4 1966171168
    %v70 = vunpack.c.0.s8 %v69
    %v71 = vlaneseq
    %v72 = vshrl.u32 %v71, 7
    %v73 = vsub.s32 %v70, %v72
    %v74 = vrot.slane %v64, %v73
    %v76 = vunpack.c.l.s4 1966171168
    %v77 = vunpack.c.0.s8 %v76
    %v78 = vlaneseq
    %v79 = vshrl.u32 %v78, 7
    %v80 = vsub.s32 %v77, %v79
    %v81 = vrot.slane %v65, %v80
    %v83 = vunpack.c.l.s4 1966171168
    %v84 = vunpack.c.0.s8 %v83
    %v85 = vlaneseq
    %v86 = vshrl.u32 %v85, 7
    %v87 = vsub.s32 %v84, %v86
    %v88 = vrot.slane %v66, %v87
    %v90 = vunpack.c.l.s4 1966171168
    %v91 = vunpack.c.0.s8 %v90
    %v92 = vlaneseq
    %v93 = vshrl.u32 %v92, 7
    %v94 = vsub.s32 %v91, %v93
    %v95 = vrot.slane %v67, %v94
    %v96 = vcombine.low %v74, %v88
    %v97 = vcombine.high %v74, %v88
    %v98 = vcombine.low %v81, %v95
    %v99 = vcombine.high %v81, %v95
    %v101 = vunpack.c.l.s4 1966171168
    %v102 = vunpack.c.0.s8 %v101
    %v103 = vlaneseq
    %v104 = vshrl.u32 %v103, 7
    %v105 = vsub.s32 %v102, %v104
    %v106 = vrot.slane %v96, %v105
    %v108 = vunpack.c.l.s4 1966171168
    %v109 = vunpack.c.0.s8 %v108
    %v110 = vlaneseq
    %v111 = vshrl.u32 %v110, 7
    %v112 = vsub.s32 %v109, %v111
    %v113 = vrot.slane %v98, %v112
    %v115 = vunpack.c.l.s4 1966171168
    %v116 = vunpack.c.0.s8 %v115
    %v117 = vlaneseq
    %v118 = vshrl.u32 %v117, 7
    %v119 = vsub.s32 %v116, %v118
    %v120 = vrot.slane %v97, %v119
    %v122 = vunpack.c.l.s4 1966171168
    %v123 = vunpack.c.0.s8 %v122
    %v124 = vlaneseq
    %v125 = vshrl.u32 %v124, 7
    %v126 = vsub.s32 %v123, %v125
    %v127 = vrot.slane %v99, %v126
    %v128 = vcombine.high %v106, %v106
    %v129 = vcombine.high %v113, %v113
    %v130 = vcombine.high %v120, %v120
    %v131 = vcombine.high %v127, %v127
    %v140 = vmul.f32 %v38, %v106
    %v141 = vmul.f32 %v39, %v120
    %v142 = vmul.f32 %v40, %v128
    %v143 = vmul.f32 %v41, %v130
    %v144 = vmul.f32 %v42, %v113
    %v145 = vmul.f32 %v43, %v127
    %v146 = vmul.f32 %v44, %v129
    %v147 = vmul.f32 %v45, %v131
    %v148 = vlaneseq
    %vm149 = vcmp.ge.s32.totalorder %v148, 0
    %vm150 = vcmp.lt.s32.totalorder %v148, 512
    %vm151 = vmand %vm149, %vm150
    %152 = vst.msk [vmem:[#allocation7] sm:$0xf] %vm151, %v140
    %153 = vst.msk [vmem:[#allocation7 + $0x4] sm:$0xf] %vm151, %v141
    %154 = vst.msk [vmem:[#allocation7 + $0x8] sm:$0xf] %vm151, %v142
    %155 = vst.msk [vmem:[#allocation7 + $0xc] sm:$0xf] %vm151, %v143
    %156 = vst.msk [vmem:[#allocation7 + $0x10] sm:$0xf] %vm151, %v144
    %157 = vst.msk [vmem:[#allocation7 + $0x14] sm:$0xf] %vm151, %v145
    %158 = vst.msk [vmem:[#allocation7 + $0x18] sm:$0xf] %vm151, %v146
    %159 = vst.msk [vmem:[#allocation7 + $0x1c] sm:$0xf] %vm151, %v147
    // Predicated region
    $region18: #{tpu_custom_call.1} parent=1 // pred_check
      _
    $region19: #{tpu_custom_call.1} parent=1 // pred_check_branch
      %161 = sbr.rel (0) target = $region21
    $region20: #{tpu_custom_call.1} parent=1 // pred_region
      %s163 = ssub.s32 512, 64
      %164 = vsyncadd [#allocation4], %s163
      %s165 = sshll.u32 [#allocation7], 4
      %s166 = int_to_ptr.vmem [resolvable:$true] %s165
      %171 = dma.vmem_to_hbm [thread:$0]  %s166, 64, %s2, [#allocation4], 64, 64, 4
    $region21: #{tpu_custom_call.1} parent=1 // pred_fallthru
      _
    // Predicated region
    $region22: #{tpu_custom_call.1} parent=1 // pred_check
      _
    $region23: #{tpu_custom_call.1} parent=1 // pred_check_branch
      %173 = sbr.rel (0) target = $region25
    $region24: #{tpu_custom_call.1} parent=1 // pred_region
      %174 = dma.done [#allocation4], 512
    $region25: #{tpu_custom_call.1} parent=1 // pred_fallthru
      _
    %175 = vsyncpa [#allocation3], 1
    %176 = vsyncpa [#allocation6], 1
    %177 = vsyncpa [#allocation4], 1

</llo_original>
